<compile_context>
chip_gen: v7x
topology: tpu7x:2x2x1
jax: 0.10.0
libtpu: 0.0.40
codegen_flags: <defaults>
</compile_context>

<pallas_src>
import jax
import jax.numpy as jnp
from jax.experimental import pallas as pl
from jax.experimental.pallas import tpu as pltpu


def _shortcut_kernel(x_ref, w_ref, b_ref, o_ref):
    # x_ref: (t_r, nsel, Wo, KC)  rows of window-packed input
    # w_ref: (nsel, KC, Cp)       pool/BN-folded, channel-padded 1x1 weight
    # b_ref: (1, Cp)              folded BatchNorm bias (f32)
    # o_ref: (t_r, Wo, Cp)
    t_r, nsel, wo, kc = x_ref.shape
    cp = o_ref.shape[-1]
    rows = t_r * wo
    acc = jnp.dot(x_ref[:, 0].reshape(rows, kc), w_ref[0],
                  preferred_element_type=jnp.float32)
    for j in range(1, nsel):  # static (1 or 2): second avg-pool row
        acc = acc + jnp.dot(x_ref[:, j].reshape(rows, kc), w_ref[j],
                            preferred_element_type=jnp.float32)
    out = acc + b_ref[...]    # folded BN bias; activation = Identity
    o_ref[...] = out.reshape(t_r, wo, cp).astype(o_ref.dtype)


def _round_up(a, b):
    return ((a + b - 1) // b) * b


def shortcut_forward(x_nchw, conv_w_pt, bn_gamma, bn_beta, bn_mean, bn_var,
                     *, stride, avg_downsample, eps=1e-5):
    """Pallas implementation of ShortCut.forward (inference-mode BatchNorm)."""
    N, C, H, W = x_nchw.shape
    Cout = conv_w_pt.shape[0]
    in_dtype = x_nchw.dtype          # x / w matmul streams run in this dtype
    out_dtype = x_nchw.dtype
    in_item = x_nchw.dtype.itemsize
    out_item = in_item

    # ---- fold BatchNorm into the 1x1-conv weight and a bias (f32) ----------
    scale = (bn_gamma.astype(jnp.float32)
             / jnp.sqrt(bn_var.astype(jnp.float32) + eps))            # (Cout,)
    bias = bn_beta.astype(jnp.float32) - bn_mean.astype(jnp.float32) * scale
    w = conv_w_pt[:, :, 0, 0].astype(jnp.float32).T * scale[None, :]  # (C,Cout)

    # ---- pad output channels to a lane-dense multiple of 128 ---------------
    Cp = _round_up(max(Cout, 1), 128)
    if Cp != Cout:
        w = jnp.pad(w, ((0, 0), (0, Cp - Cout)))
        bias = jnp.pad(bias, (0, Cp - Cout))
    bias2d = bias.reshape(1, Cp)

    # NCHW -> NHWC: one layout pass; everything below is copy-free reshape.
    # TODO(synk): if the surrounding model runs NHWC, skip this transpose and
    # the final NHWC->NCHW transpose entirely.
    x = jnp.transpose(x_nchw, (0, 2, 3, 1))

    if avg_downsample and stride != 1:
        # AvgPool2d(2, 2, ceil_mode=True) then stride-1 1x1 conv.
        # TODO(synk): ceil_mode partial windows for odd H/W need a per-window
        # divisor; standard (even) ResNet shapes are handled.
        assert H % 2 == 0 and W % 2 == 0
        G = 2
        Ho, Wo = H // 2, W // 2
        nsel = 2                            # both pool rows (dh=0,1) contribute
        KC = 2 * C                          # k = dw*C + c
        w_g = jnp.concatenate([w, w], axis=0) * 0.25            # (2C, Cp)
        w_k = jnp.stack([w_g, w_g], axis=0)                     # (2, 2C, Cp)
    elif stride != 1:
        # Strided 1x1 conv: only (dh, dw) == (0, 0) contributes.  dh != 0 rows
        # are never DMA'd (block picks g == 0); dw != 0 channels are zeroed in
        # the weight so the MXU K-reduction drops them.
        assert H % stride == 0 and W % stride == 0  # TODO(synk): ragged stride
        G = stride
        Ho, Wo = H // G, W // G
        nsel = 1
        KC = G * C
        w_g = jnp.concatenate([w, jnp.zeros((KC - C, Cp), w.dtype)], axis=0)
        w_k = w_g[None]                                         # (1, G*C, Cp)
    else:
        # Plain stride-1 1x1 conv.
        G = 1
        Ho, Wo = H, W
        nsel = 1
        KC = C
        w_k = w[None]                                           # (1, C, Cp)

    R = N * Ho
    slab = x.reshape(R, G, Wo, KC)          # pure reshape of NHWC, no HBM copy
    w_k = w_k.astype(in_dtype)

    # ---- row-tile: biggest tile whose double-buffered in+out blocks fit ----
    # comfortably inside every generation's default scoped VMEM (v7x tightest).
    bytes_per_row = nsel * Wo * KC * in_item + Wo * Cp * out_item
    vmem_budget = 16 * 1024 * 1024
    t_r = max(1, vmem_budget // (2 * bytes_per_row))
    t_r = min(t_r, R)
    if R >= 2:                              # >= 2 grid steps for v7x megacore
        t_r = min(t_r, pl.cdiv(R, 2))
    grid_r = pl.cdiv(R, t_r)                # partial tail block is masked

    cost = pl.CostEstimate(
        flops=2 * R * Wo * (nsel * KC) * Cp,
        transcendentals=0,
        bytes_accessed=(R * nsel * Wo * KC * in_item
                        + nsel * KC * Cp * in_item
                        + Cp * 4
                        + R * Wo * Cp * out_item))

    out_slab = pl.pallas_call(
        _shortcut_kernel,
        out_shape=jax.ShapeDtypeStruct((R, Wo, Cp), out_dtype),
        grid_spec=pltpu.PrefetchScalarGridSpec(
            num_scalar_prefetch=0,
            grid=(grid_r,),
            in_specs=[
                pl.BlockSpec((t_r, nsel, Wo, KC), lambda i: (i, 0, 0, 0)),
                pl.BlockSpec((nsel, KC, Cp), lambda i: (0, 0, 0)),
                pl.BlockSpec((1, Cp), lambda i: (0, 0)),
            ],
            out_specs=pl.BlockSpec((t_r, Wo, Cp), lambda i: (i, 0, 0)),
        ),
        compiler_params=pltpu.CompilerParams(
            dimension_semantics=("parallel",)),
        cost_estimate=cost,
    )(slab, w_k, bias2d)

    # Drop channel padding and go back to NCHW (slice fuses with transpose).
    out = out_slab.reshape(N, Ho, Wo, Cp)[..., :Cout].transpose(0, 3, 1, 2)
    return out


def _reference(x_nchw, conv_w_pt, bn_gamma, bn_beta, bn_mean, bn_var,
               *, stride, avg_downsample, eps=1e-5):
    """Plain-JAX f32 reference of the same forward pass."""
    x = x_nchw.astype(jnp.float32)
    if avg_downsample and stride != 1:
        N, C, H, W = x.shape
        x = x.reshape(N, C, H // 2, 2, W // 2, 2).mean(axis=(3, 5))
        s = 1
    else:
        s = stride
    x = x[:, :, ::s, ::s]
    y = jnp.einsum("nchw,oc->nohw", x, conv_w_pt[:, :, 0, 0])
    scale = bn_gamma / jnp.sqrt(bn_var + eps)
    bias = bn_beta - bn_mean * scale
    return y * scale[None, :, None, None] + bias[None, :, None, None]


if __name__ == "__main__":
    key = jax.random.PRNGKey(0)
    k_x, k_w, k_g, k_b, k_m, k_v = jax.random.split(key, 6)

    N, Cin, H, W = 2, 4, 16, 16
    Cout = 8

    x = jax.random.normal(k_x, (N, Cin, H, W), dtype=jnp.float32)
    conv_w = jax.random.normal(k_w, (Cout, Cin, 1, 1), dtype=jnp.float32) * 0.1
    gamma = 1.0 + 0.1 * jax.random.normal(k_g, (Cout,), dtype=jnp.float32)
    beta = 0.1 * jax.random.normal(k_b, (Cout,), dtype=jnp.float32)
    rmean = 0.05 * jax.random.normal(k_m, (Cout,), dtype=jnp.float32)
    rvar = jnp.abs(jax.random.normal(k_v, (Cout,), dtype=jnp.float32)) + 0.5

    cases = (
        dict(stride=2, avg_downsample=False),   # strided 1x1-conv path
        dict(stride=2, avg_downsample=True),    # 2x2 avg-pool path
        dict(stride=1, avg_downsample=False),   # plain 1x1-conv path
    )

    ok = True
    for cfg in cases:
        ref = _reference(x, conv_w, gamma, beta, rmean, rvar, **cfg)

        # f32 streams: tight match against the f32 reference.
        out = jax.block_until_ready(
            shortcut_forward(x, conv_w, gamma, beta, rmean, rvar, **cfg))
        ok &= bool(jnp.allclose(out, ref, atol=1e-5, rtol=1e-5))

        # bf16 x/w streams (halved HBM traffic on v6e/v7x), f32 accumulation.
        out_bf = jax.block_until_ready(
            shortcut_forward(x.astype(jnp.bfloat16), conv_w, gamma, beta,
                             rmean, rvar, **cfg))
        ok &= bool(jnp.allclose(out_bf.astype(jnp.float32), ref,
                                atol=5e-2, rtol=5e-2))

    if ok:
        print("KERNEL_OK")
</pallas_src>

<mosaic_0001>
module attributes {stable_mosaic.version = 11 : i64} {
  func.func @_shortcut_kernel(%arg0: i32, %arg1: memref<8x1x8x8xf32, #tpu.memory_space<vmem>>, %arg2: memref<1x8x128xf32, #tpu.memory_space<vmem>>, %arg3: memref<1x128xf32, #tpu.memory_space<vmem>>, %arg4: memref<8x8x128xf32, #tpu.memory_space<vmem>>) attributes {dimension_semantics = [#tpu.dimension_semantics<parallel>], iteration_bounds = array<i64: 2>, scalar_prefetch = 0 : i64, scratch_operands = 0 : i64, tpu.core_type = #tpu.core_type<tc>, window_params = [{transform_indices = @transform_0, window_bounds = array<i64: 8, 1, 8, 8>}, {pipeline_mode = #tpu.pipeline_mode<synchronous>, transform_indices = @transform_1, window_bounds = array<i64: 1, 8, 128>}, {pipeline_mode = #tpu.pipeline_mode<synchronous>, transform_indices = @transform_2, window_bounds = array<i64: 1, 128>}, {transform_indices = @transform_3, window_bounds = array<i64: 8, 8, 128>}]} {
    %c0 = arith.constant 0 : index
    %c0_0 = arith.constant 0 : index
    %c0_1 = arith.constant 0 : index
    %c0_2 = arith.constant 0 : index
    %0 = vector.load %arg1[%c0, %c0_0, %c0_1, %c0_2] : memref<8x1x8x8xf32, #tpu.memory_space<vmem>>, vector<8x1x8x8xf32>
    %1 = vector.shape_cast %0 : vector<8x1x8x8xf32> to vector<8x8x8xf32>
    %2 = vector.shape_cast %1 : vector<8x8x8xf32> to vector<64x8xf32>
    %c0_3 = arith.constant 0 : index
    %c0_4 = arith.constant 0 : index
    %c0_5 = arith.constant 0 : index
    %3 = vector.load %arg2[%c0_3, %c0_4, %c0_5] : memref<1x8x128xf32, #tpu.memory_space<vmem>>, vector<1x8x128xf32>
    %4 = vector.shape_cast %3 : vector<1x8x128xf32> to vector<8x128xf32>
    %cst = arith.constant dense<0.000000e+00> : vector<64x128xf32>
    %5 = tpu.matmul %2, %4, %cst {dimension_numbers = #tpu.dot_dimension_numbers<[1], [0], [0], [1], [0, 0, 1, 1], [], []>} : vector<64x8xf32>, vector<8x128xf32>, vector<64x128xf32> -> vector<64x128xf32>
    %c0_6 = arith.constant 0 : index
    %c0_7 = arith.constant 0 : index
    %6 = vector.load %arg3[%c0_6, %c0_7] : memref<1x128xf32, #tpu.memory_space<vmem>>, vector<1x128xf32>
    %7 = vector.broadcast %6 : vector<1x128xf32> to vector<64x128xf32>
    %8 = arith.addf %5, %7 : vector<64x128xf32>
    %9 = vector.shape_cast %8 : vector<64x128xf32> to vector<8x8x128xf32>
    %c0_8 = arith.constant 0 : index
    %c0_9 = arith.constant 0 : index
    %c0_10 = arith.constant 0 : index
    %10 = vector.load %arg4[%c0_8, %c0_9, %c0_10] : memref<8x8x128xf32, #tpu.memory_space<vmem>>, vector<8x8x128xf32>
    tpu.vector_store %arg4[%c0_8, %c0_9, %c0_10], %9 {strides = array<i32>} : memref<8x8x128xf32, #tpu.memory_space<vmem>>, vector<8x8x128xf32>,
    return
  }
  func.func @transform_0(%arg0: i32) -> (i32, i32, i32, i32) {
    %c0_i32 = arith.constant 0 : i32
    %c0_i32_0 = arith.constant 0 : i32
    %c0_i32_1 = arith.constant 0 : i32
    %c0_i32_2 = arith.constant 0 : i32
    return %arg0, %c0_i32, %c0_i32_0, %c0_i32_1 : i32, i32, i32, i32
  }
  func.func @transform_1(%arg0: i32) -> (i32, i32, i32) {
    %c0_i32 = arith.constant 0 : i32
    %c0_i32_0 = arith.constant 0 : i32
    %c0_i32_1 = arith.constant 0 : i32
    %c0_i32_2 = arith.constant 0 : i32
    return %c0_i32, %c0_i32_0, %c0_i32_1 : i32, i32, i32
  }
  func.func @transform_2(%arg0: i32) -> (i32, i32) {
    %c0_i32 = arith.constant 0 : i32
    %c0_i32_0 = arith.constant 0 : i32
    %c0_i32_1 = arith.constant 0 : i32
    return %c0_i32, %c0_i32_0 : i32, i32
  }
  func.func @transform_3(%arg0: i32) -> (i32, i32, i32) {
    %c0_i32 = arith.constant 0 : i32
    %c0_i32_0 = arith.constant 0 : i32
    %c0_i32_1 = arith.constant 0 : i32
    return %arg0, %c0_i32, %c0_i32_0 : i32, i32, i32
  }
}

</mosaic_0001>

<llo_original>
// kernel: tpu_custom_call.1
$region0: #{tpu_custom_call.1}
  #allocation0 [shape = 'u32[]', space=smem, size = 0x4, offset = 0x4, fixed_abs, tag = 'smem constant byte address 0x4 - core index']
  #allocation1 [shape = 'u32[144,128]{1,0:T(1,128)}', space=vmem, size = 0x12000, scoped, tag = 'internal scratch']
  %s0 = inlined_call_operand.vmem [shape: f32[16,2,8,8], index: 0, kind: input, shape index: {}]
  %s1 = inlined_call_operand.vmem [shape: f32[1,8,128], index: 1, kind: input, shape index: {}]
  %s2 = inlined_call_operand.vmem [shape: f32[1,128], index: 2, kind: input, shape index: {}]
  %s3 = inlined_call_operand.hbm [shape: f32[16,8,128], index: 3, kind: output, shape index: {}]
  %s4 = sld [smem:[#allocation0]]
  $region83: #{tpu_custom_call.1} parent=0
    _
  %s6 = ssub.s32 1, %s4
  %s7 = scalar_select 0, %s6, %s4
  $region1: #{tpu_custom_call.1} parent=0
    #allocation2 [shape = 'u8[65536]{0}', space=vmem, size = 0x10000, scoped, tag = 'input window, operand 0']
    #allocation3 [shape = 'u8[65536]{0}', space=vmem, size = 0x10000, scoped, tag = 'output window, operand 0']
    #allocation4 [shape = 's32[2]{0}', space=sflag, size = 0x8, scoped, tag = 'scoped memory for tpu_custom_call.1']
    %8 = vsyncpa [#allocation4], 0
    %s9 = scalar_lea.sflag [#allocation4], 1
    %10 = vsyncpa %s9, 0
    loop: start=0, step=1, limit=4
    $region2: #{tpu_custom_call.1} parent=1 // loop_pre_header
      _
    $region3: #{tpu_custom_call.1} parent=1 // loop_header
      %s12 = sphi 0, %s16
      %p13 = scmp.ge.s32.totalorder %s12, 4
      %s22 = sphi 0, %s24
      %s25 = sphi 0, %s22
      %s26 = sphi 0, %s25
      %s42 = sphi 0, %s26
      %s46 = sphi 0, %s46
      %s48 = sphi 0, %s46
      %s49 = sphi 0, %s48
      %s63 = sphi 0, %s49
      %s67 = sphi 0, %s67
      %s69 = sphi 0, %s67
      %s70 = sphi 0, %s69
      %s84 = sphi 0, %s70
      %s90 = sphi 0, %s92
      %s93 = sphi 0, %s90
      %s94 = sphi 0, %s93
      %s110 = sphi 0, %s94
    $region4: #{tpu_custom_call.1} parent=1 // loop_header_branch
      %15 = sbr.rel (%p13) target = $region8
    $region5: #{tpu_custom_call.1} parent=1 // loop_body
      %s17 = ssub.s32 %s12, 1
      %s18 = ssub.s32 %s12, 2
      %s19 = sadd.s32 %s12, 1
      %s20 = ssub.s32 %s12, %s19
      %p21 = scmp.eq.s32.totalorder %s20, 0
      %s23 = sadd.s32 %s22, 1
      %s24 = scalar_select %p21, %s22, %s23
      %p27 = pneg %p21
      %p28 = scmp.eq.s32.totalorder %s12, 1
      %p29 = por %p27, %p28
      %p30 = scmp.ne.s32.totalorder %s22, %s25
      %p31 = scmp.eq.s32.totalorder %s12, 0
      %p32 = por %p30, %p31
      %p33 = scmp.ne.s32.totalorder %s22, %s25
      %p34 = scmp.eq.s32.totalorder %s17, 1
      %p35 = por %p33, %p34
      %p36 = scmp.ne.s32.totalorder %s25, %s26
      %p37 = scmp.eq.s32.totalorder %s17, 0
      %p38 = por %p36, %p37
      %p39 = scmp.ne.s32.totalorder %s25, %s26
      %p40 = scmp.eq.s32.totalorder %s18, 1
      %p41 = por %p39, %p40
      %p43 = scmp.ne.s32.totalorder %s26, %s42
      %p44 = scmp.eq.s32.totalorder %s18, 0
      %p45 = por %p43, %p44
      %s47 = sadd.s32 %s46, 1
      %p50 = scmp.eq.s32.totalorder %s12, 1
      %p51 = scmp.ne.s32.totalorder %s46, %s48
      %p52 = scmp.eq.s32.totalorder %s12, 0
      %p53 = por %p51, %p52
      %p54 = scmp.ne.s32.totalorder %s46, %s48
      %p55 = scmp.eq.s32.totalorder %s17, 1
      %p56 = por %p54, %p55
      %p57 = scmp.ne.s32.totalorder %s48, %s49
      %p58 = scmp.eq.s32.totalorder %s17, 0
      %p59 = por %p57, %p58
      %p60 = scmp.ne.s32.totalorder %s48, %s49
      %p61 = scmp.eq.s32.totalorder %s18, 1
      %p62 = por %p60, %p61
      %p64 = scmp.ne.s32.totalorder %s49, %s63
      %p65 = scmp.eq.s32.totalorder %s18, 0
      %p66 = por %p64, %p65
      %s68 = sadd.s32 %s67, 1
      %p71 = scmp.eq.s32.totalorder %s12, 1
      %p72 = scmp.ne.s32.totalorder %s67, %s69
      %p73 = scmp.eq.s32.totalorder %s12, 0
      %p74 = por %p72, %p73
      %p75 = scmp.ne.s32.totalorder %s67, %s69
      %p76 = scmp.eq.s32.totalorder %s17, 1
      %p77 = por %p75, %p76
      %p78 = scmp.ne.s32.totalorder %s69, %s70
      %p79 = scmp.eq.s32.totalorder %s17, 0
      %p80 = por %p78, %p79
      %p81 = scmp.ne.s32.totalorder %s69, %s70
      %p82 = scmp.eq.s32.totalorder %s18, 1
      %p83 = por %p81, %p82
      %p85 = scmp.ne.s32.totalorder %s70, %s84
      %p86 = scmp.eq.s32.totalorder %s18, 0
      %p87 = por %p85, %p86
      %s88 = ssub.s32 %s12, %s19
      %p89 = scmp.eq.s32.totalorder %s88, 0
      %s91 = sadd.s32 %s90, 1
      %s92 = scalar_select %p89, %s90, %s91
      %p95 = pneg %p89
      %p96 = scmp.eq.s32.totalorder %s12, 1
      %p97 = por %p95, %p96
      %p98 = scmp.ne.s32.totalorder %s90, %s93
      %p99 = scmp.eq.s32.totalorder %s12, 0
      %p100 = por %p98, %p99
      %p101 = scmp.ne.s32.totalorder %s90, %s93
      %p102 = scmp.eq.s32.totalorder %s17, 1
      %p103 = por %p101, %p102
      %p104 = scmp.ne.s32.totalorder %s93, %s94
      %p105 = scmp.eq.s32.totalorder %s17, 0
      %p106 = por %p104, %p105
      %p107 = scmp.ne.s32.totalorder %s93, %s94
      %p108 = scmp.eq.s32.totalorder %s18, 1
      %p109 = por %p107, %p108
      %p111 = scmp.ne.s32.totalorder %s94, %s110
      %p112 = scmp.eq.s32.totalorder %s18, 0
      %p113 = por %p111, %p112
      %p114 = scmp.le.s32.totalorder 1, %s12
      %p115 = scmp.lt.s32.totalorder %s12, 3
      %p116 = pnand %p114, %p115
      %p117 = pneg %p116
      // Predicated region
      $region9: #{tpu_custom_call.1} parent=5 // pred_check
        _
      $region10: #{tpu_custom_call.1} parent=5 // pred_check_branch
        %119 = sbr.rel (%p116) target = $region12
      $region11: #{tpu_custom_call.1} parent=5 // pred_region
        %s120 = ssub.s32 %s12, 1
        // Predicated region
        $region13: #{tpu_custom_call.1} parent=11 // pred_check
          %p121 = pneg %p59
        $region14: #{tpu_custom_call.1} parent=11 // pred_check_branch
          %123 = sbr.rel (%p121) target = $region16
        $region15: #{tpu_custom_call.1} parent=11 // pred_region
          _
        $region16: #{tpu_custom_call.1} parent=11 // pred_fallthru
          _
        // Predicated region
        $region17: #{tpu_custom_call.1} parent=11 // pred_check
          %p124 = pneg %p80
        $region18: #{tpu_custom_call.1} parent=11 // pred_check_branch
          %126 = sbr.rel (%p124) target = $region20
        $region19: #{tpu_custom_call.1} parent=11 // pred_region
          _
        $region20: #{tpu_custom_call.1} parent=11 // pred_fallthru
          _
      $region12: #{tpu_custom_call.1} parent=5 // pred_fallthru
        _
      %p127 = scmp.lt.s32.totalorder %s12, 2
      // Predicated region
      $region21: #{tpu_custom_call.1} parent=5 // pred_check
        %p128 = pneg %p127
      $region22: #{tpu_custom_call.1} parent=5 // pred_check_branch
        %130 = sbr.rel (%p128) target = $region24
      $region23: #{tpu_custom_call.1} parent=5 // pred_region
        // Predicated region
        $region25: #{tpu_custom_call.1} parent=23 // pred_check
          %p131 = pneg %p32
        $region26: #{tpu_custom_call.1} parent=23 // pred_check_branch
          %133 = sbr.rel (%p131) target = $region28
        $region27: #{tpu_custom_call.1} parent=23 // pred_region
          %s134 = sand.u32 %s22, 1
          %s135 = sand.u32 %s22, 1
          %s136 = smul.addr %s135, 64
          %s137 = scalar_lea.vmem [#allocation2], %s136
          %s138 = smul.u32 8, %s12
          %s139 = smul.addr %s138, 2
          %s140 = smul.addr %s139, 8
          %s141 = scalar_lea.vmem %s0, %s140
          // Predicated region
          $region29: #{tpu_custom_call.1} parent=27 // pred_check
            _
          $region30: #{tpu_custom_call.1} parent=27 // pred_check_branch
            %143 = sbr.rel (0) target = $region32
          $region31: #{tpu_custom_call.1} parent=27 // pred_region
            // Predicated region
            $region33: #{tpu_custom_call.1} parent=31 // pred_check
              _
            $region34: #{tpu_custom_call.1} parent=31 // pred_check_branch
              %145 = sbr.rel (0) target = $region36
            $region35: #{tpu_custom_call.1} parent=31 // pred_region
              // Predicated region
              $region48: #{tpu_custom_call.1} parent=35 // pred_check
                _
              $region49: #{tpu_custom_call.1} parent=35 // pred_check_branch
                %174 = sbr.rel (0) target = $region51
              $region50: #{tpu_custom_call.1} parent=35 // pred_region
                loop: start=0, step=1, limit=1
                $region52: #{tpu_custom_call.1} parent=50 // loop_pre_header
                  _
                $region53: #{tpu_custom_call.1} parent=50 // loop_header
                  %s176 = sphi 0, %s180
                  %p177 = scmp.ge.s32.totalorder %s176, 1
                  %s181 = sphi %s141, %s141
                  %s182 = sphi %s137, %s137
                $region54: #{tpu_custom_call.1} parent=50 // loop_header_branch
                  %179 = sbr.rel (%p177) target = $region58
                $region55: #{tpu_custom_call.1} parent=50 // loop_body
                  %v183 = vld [vmem:[%s181] sm:$0xff]
                  %184 = vst [vmem:[%s182] sm:$0xff] %v183
                  %v185 = vld [vmem:[%s181 + $0x10] sm:$0xff]
                  %186 = vst [vmem:[%s182 + $0x8] sm:$0xff] %v185
                  %v187 = vld [vmem:[%s181 + $0x20] sm:$0xff]
                  %188 = vst [vmem:[%s182 + $0x10] sm:$0xff] %v187
                  %v189 = vld [vmem:[%s181 + $0x30] sm:$0xff]
                  %190 = vst [vmem:[%s182 + $0x18] sm:$0xff] %v189
                  %v191 = vld [vmem:[%s181 + $0x40] sm:$0xff]
                  %192 = vst [vmem:[%s182 + $0x20] sm:$0xff] %v191
                  %v193 = vld [vmem:[%s181 + $0x50] sm:$0xff]
                  %194 = vst [vmem:[%s182 + $0x28] sm:$0xff] %v193
                  %v195 = vld [vmem:[%s181 + $0x60] sm:$0xff]
                  %196 = vst [vmem:[%s182 + $0x30] sm:$0xff] %v195
                  %v197 = vld [vmem:[%s181 + $0x70] sm:$0xff]
                  %198 = vst [vmem:[%s182 + $0x38] sm:$0xff] %v197
                $region56: #{tpu_custom_call.1} parent=50 // loop_footer
                  %s180 = sadd.s32 1, %s176
                $region57: #{tpu_custom_call.1} parent=50 // loop_footer_branch
                  %175 = sbr.rel target = $region53
                $region58: #{tpu_custom_call.1} parent=50 // loop_exit
                  _
              $region51: #{tpu_custom_call.1} parent=35 // pred_fallthru
                _
              // Predicated region
              $region59: #{tpu_custom_call.1} parent=35 // pred_check
                _
              $region60: #{tpu_custom_call.1} parent=35 // pred_check_branch
                %200 = sbr.rel target = $region62
              $region61: #{tpu_custom_call.1} parent=35 // pred_region
                _
              $region62: #{tpu_custom_call.1} parent=35 // pred_fallthru
                _
            $region36: #{tpu_custom_call.1} parent=31 // pred_fallthru
              _
            // Predicated region
            $region37: #{tpu_custom_call.1} parent=31 // pred_check
              _
            $region38: #{tpu_custom_call.1} parent=31 // pred_check_branch
              %147 = sbr.rel target = $region40
            $region39: #{tpu_custom_call.1} parent=31 // pred_region
              loop: start=0, step=1, limit=1
              $region41: #{tpu_custom_call.1} parent=39 // loop_pre_header
                _
              $region42: #{tpu_custom_call.1} parent=39 // loop_header
                %s150 = sphi 0, %s154
                %p151 = scmp.ge.s32.totalorder %s150, 1
                %s155 = sphi %s141, %s141
                %s156 = sphi %s137, %s137
              $region43: #{tpu_custom_call.1} parent=39 // loop_header_branch
                %153 = sbr.rel (%p151) target = $region47
              $region44: #{tpu_custom_call.1} parent=39 // loop_body
                %v157 = vld [vmem:[%s155] sm:$0xff]
                %158 = vst [vmem:[%s156] sm:$0xff] %v157
                %v159 = vld [vmem:[%s155 + $0x10] sm:$0xff]
                %160 = vst [vmem:[%s156 + $0x8] sm:$0xff] %v159
                %v161 = vld [vmem:[%s155 + $0x20] sm:$0xff]
                %162 = vst [vmem:[%s156 + $0x10] sm:$0xff] %v161
                %v163 = vld [vmem:[%s155 + $0x30] sm:$0xff]
                %164 = vst [vmem:[%s156 + $0x18] sm:$0xff] %v163
                %v165 = vld [vmem:[%s155 + $0x40] sm:$0xff]
                %166 = vst [vmem:[%s156 + $0x20] sm:$0xff] %v165
                %v167 = vld [vmem:[%s155 + $0x50] sm:$0xff]
                %168 = vst [vmem:[%s156 + $0x28] sm:$0xff] %v167
                %v169 = vld [vmem:[%s155 + $0x60] sm:$0xff]
                %170 = vst [vmem:[%s156 + $0x30] sm:$0xff] %v169
                %v171 = vld [vmem:[%s155 + $0x70] sm:$0xff]
                %172 = vst [vmem:[%s156 + $0x38] sm:$0xff] %v171
              $region45: #{tpu_custom_call.1} parent=39 // loop_footer
                %s154 = sadd.s32 1, %s150
              $region46: #{tpu_custom_call.1} parent=39 // loop_footer_branch
                %149 = sbr.rel target = $region42
              $region47: #{tpu_custom_call.1} parent=39 // loop_exit
                _
            $region40: #{tpu_custom_call.1} parent=31 // pred_fallthru
              _
          $region32: #{tpu_custom_call.1} parent=27 // pred_fallthru
            _
          %201 = vnop
        $region28: #{tpu_custom_call.1} parent=23 // pred_fallthru
          _
      $region24: #{tpu_custom_call.1} parent=5 // pred_fallthru
        _
      %p202 = scmp.le.s32.totalorder 1, %s12
      %p203 = scmp.lt.s32.totalorder %s12, 3
      %p204 = pnand %p202, %p203
      %p205 = pneg %p204
      // Predicated region
      $region63: #{tpu_custom_call.1} parent=5 // pred_check
        _
      $region64: #{tpu_custom_call.1} parent=5 // pred_check_branch
        %207 = sbr.rel (%p204) target = $region66
      $region65: #{tpu_custom_call.1} parent=5 // pred_region
        %s208 = ssub.s32 %s12, 1
        %s209 = sand.u32 %s25, 1
        %s210 = sand.u32 %s25, 1
        %s211 = smul.addr %s210, 64
        %s212 = scalar_lea.vmem [#allocation2], %s211
        // Predicated region
        $region67: #{tpu_custom_call.1} parent=65 // pred_check
          %p213 = pneg %p38
        $region68: #{tpu_custom_call.1} parent=65 // pred_check_branch
          %215 = sbr.rel (%p213) target = $region70
        $region69: #{tpu_custom_call.1} parent=65 // pred_region
          _
        $region70: #{tpu_custom_call.1} parent=65 // pred_fallthru
          _
        %s216 = sand.u32 %s25, 1
        %s217 = sand.u32 %s25, 1
        %s218 = smul.addr %s217, 64
        %s219 = scalar_lea.vmem [#allocation2], %s218
        %p220 = pneg %p38
        %p221 = pneg %p35
        %p222 = pneg %p59
        %p223 = pneg %p56
        %p224 = pneg %p80
        %p225 = pneg %p77
        %p226 = pneg %p106
        %p227 = pneg %p103
        %s228 = sand.u32 %s93, 1
        %s229 = scalar_lea.sflag [#allocation4], %s228
        %s230 = sand.u32 %s93, 1
        %s231 = smul.addr %s230, 64
        %s232 = scalar_lea.vmem [#allocation3], %s231
        %s233 = smul.u32 8, %s17
        %s234 = smul.u32 8, %s17
        %v235 = vld [vmem:[%s212] sm:$0xff]
        %v236 = vld [vmem:[%s212 + $0x8] sm:$0xff]
        %v237 = vld [vmem:[%s212 + $0x10] sm:$0xff]
        %v238 = vld [vmem:[%s212 + $0x18] sm:$0xff]
        %v239 = vld [vmem:[%s212 + $0x20] sm:$0xff]
        %v240 = vld [vmem:[%s212 + $0x28] sm:$0xff]
        %v241 = vld [vmem:[%s212 + $0x30] sm:$0xff]
        %v242 = vld [vmem:[%s212 + $0x38] sm:$0xff]
        %v243 = vld [vmem:[%s1] sm:$0xff]
        %v244 = vld [vmem:[%s2] sm:$0x1]
        %v246 = vlaneseq
        %v247 = vshrl.u32 %v246, 7
        %v248 = vsub.s32 0, %v247
        %v249 = vrot.slane %v244, %v248
        %vm251 = vcmask 64512
        %v253 = vsel %vm251, %v235, 0
        %v256 = vsel %vm251, %v236, 0
        %v259 = vsel %vm251, %v237, 0
        %v262 = vsel %vm251, %v238, 0
        %v265 = vsel %vm251, %v239, 0
        %v268 = vsel %vm251, %v240, 0
        %v271 = vsel %vm251, %v241, 0
        %v274 = vsel %vm251, %v242, 0
        %276 = vmatprep.subr.mxu0 0.0
        %277 = vmatpush1.msra.mxu0 %v243
        %278 = vmatprep.subr.mxu0 0.0
        %279 = vmatpush1.msra.mxu0 0.0
        %280 = vmatprep.subr.mxu0 0.0
        %281 = vmatpush1.msra.mxu0 0.0
        %282 = vmatprep.subr.mxu0 0.0
        %283 = vmatpush1.msra.mxu0 0.0
        %284 = vmatprep.subr.mxu0 0.0
        %285 = vmatpush1.msra.mxu0 0.0
        %286 = vmatprep.subr.mxu0 0.0
        %287 = vmatpush1.msra.mxu0 0.0
        %288 = vmatprep.subr.mxu0 0.0
        %289 = vmatpush1.msra.mxu0 0.0
        %290 = vmatprep.subr.mxu0 0.0
        %291 = vmatpush1.msra.mxu0 0.0
        %292 = vmatprep.subr.mxu0 0.0
        %293 = vmatpush1.msra.mxu0 0.0
        %294 = vmatprep.subr.mxu0 0.0
        %295 = vmatpush1.msra.mxu0 0.0
        %296 = vmatprep.subr.mxu0 0.0
        %297 = vmatpush1.msra.mxu0 0.0
        %298 = vmatprep.subr.mxu0 0.0
        %299 = vmatpush1.msra.mxu0 0.0
        %300 = vmatprep.subr.mxu0 0.0
        %301 = vmatpush1.msra.mxu0 0.0
        %302 = vmatprep.subr.mxu0 0.0
        %303 = vmatpush1.msra.mxu0 0.0
        %304 = vmatprep.subr.mxu0 0.0
        %305 = vmatpush1.msra.mxu0 0.0
        %306 = vmatprep.subr.mxu0 0.0
        %307 = vmatpush1.msra.mxu0 0.0
        %308 = vmatprep.subr.mxu0 0.0
        %309 = vmatpush1.msra.mxu0 0.0
        %310 = vmatprep.subr.mxu0 0.0
        %311 = vmatpush1.msra.mxu0 0.0
        %312 = vmatprep.subr.mxu0 0.0
        %313 = vmatpush1.msra.mxu0 0.0
        %314 = vmatprep.subr.mxu0 0.0
        %315 = vmatpush1.msra.mxu0 0.0
        %316 = vmatprep.subr.mxu0 0.0
        %317 = vmatpush1.msra.mxu0 0.0
        %318 = vmatprep.subr.mxu0 0.0
        %319 = vmatpush1.msra.mxu0 0.0
        %320 = vmatprep.subr.mxu0 0.0
        %321 = vmatpush1.msra.mxu0 0.0
        %322 = vmatprep.subr.mxu0 0.0
        %323 = vmatpush1.msra.mxu0 0.0
        %324 = vmatprep.subr.mxu0 0.0
        %325 = vmatpush1.msra.mxu0 0.0
        %326 = vmatprep.subr.mxu0 0.0
        %327 = vmatpush1.msra.mxu0 0.0
        %328 = vmatprep.subr.mxu0 0.0
        %329 = vmatpush1.msra.mxu0 0.0
        %330 = vmatprep.subr.mxu0 0.0
        %331 = vmatpush1.msra.mxu0 0.0
        %332 = vmatprep.subr.mxu0 0.0
        %333 = vmatpush1.msra.mxu0 0.0
        %334 = vmatprep.subr.mxu0 0.0
        %335 = vmatpush1.msra.mxu0 0.0
        %336 = vmatprep.subr.mxu0 0.0
        %337 = vmatpush1.msra.mxu0 0.0
        %338 = vmatprep.subr.mxu0 0.0
        %339 = vmatpush1.msra.mxu0 0.0
        %340 = vmatprep.mubr.f32.mxu0 0.0
        %341 = vmatmul.mubr.f32.gmra.mrb[0].mxu0 %v253
        %v342 = vpop.f32.mrb[0].mxu0
        %v343 = vadd.f32 %v249, %v342
        %v344 = vpop.f32.mrb[0].mxu0
        %345 = vmatprep.mubr.f32.mxu0 0.0
        %346 = vmatmul.mubr.f32.gmra.mrb[0].mxu0 %v256
        %v347 = vpop.f32.mrb[0].mxu0
        %v348 = vadd.f32 %v249, %v347
        %v349 = vpop.f32.mrb[0].mxu0
        %350 = vmatprep.mubr.f32.mxu0 0.0
        %351 = vmatmul.mubr.f32.gmra.mrb[0].mxu0 %v259
        %v352 = vpop.f32.mrb[0].mxu0
        %v353 = vadd.f32 %v249, %v352
        %v354 = vpop.f32.mrb[0].mxu0
        %355 = vmatprep.mubr.f32.mxu0 0.0
        %356 = vmatmul.mubr.f32.gmra.mrb[0].mxu0 %v262
        %v357 = vpop.f32.mrb[0].mxu0
        %v358 = vadd.f32 %v249, %v357
        %v359 = vpop.f32.mrb[0].mxu0
        %360 = vmatprep.mubr.f32.mxu0 0.0
        %361 = vmatmul.mubr.f32.gmra.mrb[0].mxu0 %v265
        %v362 = vpop.f32.mrb[0].mxu0
        %v363 = vadd.f32 %v249, %v362
        %v364 = vpop.f32.mrb[0].mxu0
        %365 = vmatprep.mubr.f32.mxu0 0.0
        %366 = vmatmul.mubr.f32.gmra.mrb[0].mxu0 %v268
        %v367 = vpop.f32.mrb[0].mxu0
        %v368 = vadd.f32 %v249, %v367
        %v369 = vpop.f32.mrb[0].mxu0
        %370 = vmatprep.mubr.f32.mxu0 0.0
        %371 = vmatmul.mubr.f32.gmra.mrb[0].mxu0 %v271
        %v372 = vpop.f32.mrb[0].mxu0
        %v373 = vadd.f32 %v249, %v372
        %v374 = vpop.f32.mrb[0].mxu0
        %375 = vmatprep.mubr.f32.mxu0 0.0
        %376 = vmatmul.mubr.f32.gmra.mrb[0].mxu0 %v274
        %v377 = vpop.f32.mrb[0].mxu0
        %v378 = vadd.f32 %v249, %v377
        %v379 = vpop.f32.mrb[0].mxu0
        %380 = vdwg.mxu0
        %381 = vst [vmem:[%s232] sm:$0xff] %v343
        %382 = vst [vmem:[%s232 + $0x8] sm:$0xff] %v348
        %383 = vst [vmem:[%s232 + $0x10] sm:$0xff] %v353
        %384 = vst [vmem:[%s232 + $0x18] sm:$0xff] %v358
        %385 = vst [vmem:[%s232 + $0x20] sm:$0xff] %v363
        %386 = vst [vmem:[%s232 + $0x28] sm:$0xff] %v368
        %387 = vst [vmem:[%s232 + $0x30] sm:$0xff] %v373
        %388 = vst [vmem:[%s232 + $0x38] sm:$0xff] %v378
        %s389 = sand.u32 %s93, 1
        %s390 = scalar_lea.sflag [#allocation4], %s389
        %s391 = sand.u32 %s93, 1
        %s392 = smul.addr %s391, 64
        %s393 = scalar_lea.vmem [#allocation3], %s392
        // Predicated region
        $region71: #{tpu_custom_call.1} parent=65 // pred_check
          %p394 = pneg %p103
        $region72: #{tpu_custom_call.1} parent=65 // pred_check_branch
          %396 = sbr.rel (%p394) target = $region74
        $region73: #{tpu_custom_call.1} parent=65 // pred_region
          %s397 = smul.u32 8, %s17
          %s399 = ssub.s32 1024, 1024
          %400 = vsyncadd %s390, %s399
          %s401 = smul.addr %s397, 128
          %s402 = scalar_lea.hbm %s3, %s401
          %s403 = sshll.u32 %s393, 4
          %s404 = int_to_ptr.vmem [resolvable:$true] %s403
          %409 = dma.vmem_to_hbm [thread:$0]  %s404, 1024, %s402, %s390, 128, 128, 8
        $region74: #{tpu_custom_call.1} parent=65 // pred_fallthru
          _
      $region66: #{tpu_custom_call.1} parent=5 // pred_fallthru
        _
      %p410 = scmp.le.s32.totalorder 2, %s12
      // Predicated region
      $region75: #{tpu_custom_call.1} parent=5 // pred_check
        %p411 = pneg %p410
      $region76: #{tpu_custom_call.1} parent=5 // pred_check_branch
        %413 = sbr.rel (%p411) target = $region78
      $region77: #{tpu_custom_call.1} parent=5 // pred_region
        %s414 = ssub.s32 %s12, 2
        // Predicated region
        $region79: #{tpu_custom_call.1} parent=77 // pred_check
          %p415 = pneg %p109
        $region80: #{tpu_custom_call.1} parent=77 // pred_check_branch
          %417 = sbr.rel (%p415) target = $region82
        $region81: #{tpu_custom_call.1} parent=77 // pred_region
          %s418 = sand.u32 %s94, 1
          %s419 = scalar_lea.sflag [#allocation4], %s418
          %s420 = sand.u32 %s94, 1
          %s421 = smul.addr %s420, 64
          %s422 = scalar_lea.vmem [#allocation3], %s421
          %423 = dma.done %s419, 1024
        $region82: #{tpu_custom_call.1} parent=77 // pred_fallthru
          _
      $region78: #{tpu_custom_call.1} parent=5 // pred_fallthru
        _
    $region6: #{tpu_custom_call.1} parent=1 // loop_footer
      %s16 = sadd.s32 1, %s12
    $region7: #{tpu_custom_call.1} parent=1 // loop_footer_branch
      %11 = sbr.rel target = $region3
    $region8: #{tpu_custom_call.1} parent=1 // loop_exit
      _
    %424 = vsyncpa [#allocation4], 1
    %s425 = scalar_lea.sflag [#allocation4], 1
    %426 = vsyncpa %s425, 1

</llo_original>
